<compile_context>
chip_gen: v5e
topology: v5e:2x2
jax: 0.10.0
libtpu: 0.0.40
codegen_flags: <defaults>
</compile_context>

<pallas_src>
import math
import numpy as np

import jax
import jax.numpy as jnp
from jax import lax
from jax.experimental import pallas as pl
from jax.experimental.pallas import tpu as pltpu


def _pick_block_b(B, max_block=8):
    """Largest divisor of B (<= max_block) that still leaves >= 2 grid steps."""
    if B <= 1:
        return 1
    best = 1
    for bb in range(1, min(B // 2, max_block) + 1):
        if B % bb == 0:
            best = bb
    return best


def _make_kernel():
    # dot_general dimension numbers (all in natural orientation: no transposes).
    dn_last_first = (((2,), (0,)), ((), ()))      # (b,i,k) x (k,m) -> (b,i,m)
    dn_batched = (((2,), (1,)), ((0,), (0,)))     # (b,c,i) x (b,i,k) -> (b,c,k)

    def kernel(x_ref, a_ref, w_ref, b_ref, cmat_ref, mcls_ref, mfold_ref, out_ref):
        x = x_ref[...].astype(jnp.float32)    # (Bb, NS, D)   support features
        a = a_ref[...]                        # (Bb, NS, N)   support adjacency rows
        w = w_ref[...]                        # (D, 1)        proj weight
        bias = b_ref[0]                       # scalar (SMEM) proj bias
        cmat = cmat_ref[...]                  # (Bb, NS, NS)  I - per-class mean
        mcls = mcls_ref[...]                  # (Bb, C, NS)   class one-hot
        mfold = mfold_ref[...]                # (N, S+Q)      column fold matrix

        # Linear(in_dim, 1) + sigmoid over all Bb*NS support nodes in one MXU pass.
        logits = lax.dot_general(x, w, dn_last_first,
                                 preferred_element_type=jnp.float32) + bias
        s = jax.nn.sigmoid(logits)                                   # (Bb, NS, 1)

        # Per-class centering (score - class mean) as a constant batched matmul.
        sc = lax.dot_general(cmat, s, dn_batched,
                             preferred_element_type=jnp.float32)     # (Bb, NS, 1)

        # Fold adjacency columns: support cols -> shot buckets, query cols -> identity.
        a_fold = lax.dot_general(a, mfold, dn_last_first,
                                 preferred_element_type=jnp.float32)  # (Bb, NS, S+Q)

        # Fused rhs [features | folded adjacency]; one weighted class-sum matmul,
        # one full-tile lane-dense store.
        r = jnp.concatenate([x, a_fold], axis=-1)                     # (Bb, NS, D+S+Q)
        out = lax.dot_general(mcls, sc * r, dn_batched,
                              preferred_element_type=jnp.float32)     # (Bb, C, D+S+Q)
        out_ref[...] = out.astype(out_ref.dtype)

    return kernel


def classpro_forward(A, X, w, b, num_classes, num_shots, num_queries, block_b=None):
    """Pallas implementation of ClassPro.forward. Returns (A_new, X_new)."""
    B, N, D = X.shape
    C, S, Q = num_classes, num_shots, num_queries
    NS = C * S
    K = D + S + Q
    assert N == NS + Q
    # Same implicit constraint as the PyTorch reference code.
    assert S == C, "ClassPro's adjacency re-assembly requires num_shots == num_classes"

    if block_b is None:
        block_b = _pick_block_b(B)
    assert B % block_b == 0
    grid_b = B // block_b

    # ---- compile-time constants (hoisted out of the kernel body) ----
    cls_of = np.arange(NS) // S
    same_class = (cls_of[:, None] == cls_of[None, :]).astype(np.float32)
    cmat = np.eye(NS, dtype=np.float32) - same_class / float(S)       # centering
    mcls = (np.arange(C)[:, None] == cls_of[None, :]).astype(np.float32)  # (C, NS)
    mfold = np.zeros((N, S + Q), np.float32)
    mfold[np.arange(NS), np.arange(NS) % S] = 1.0                     # shot fold
    mfold[NS + np.arange(Q), S + np.arange(Q)] = 1.0                  # query identity

    cmat_b = jnp.asarray(np.tile(cmat, (block_b, 1, 1)))              # (Bb, NS, NS)
    mcls_b = jnp.asarray(np.tile(mcls, (block_b, 1, 1)))              # (Bb, C, NS)
    mfold_j = jnp.asarray(mfold)                                      # (N, S+Q)

    fused = pl.pallas_call(
        _make_kernel(),
        out_shape=jax.ShapeDtypeStruct((B, C, K), X.dtype),
        grid_spec=pltpu.PrefetchScalarGridSpec(
            num_scalar_prefetch=0,
            grid=(grid_b,),
            in_specs=[
                pl.BlockSpec((block_b, NS, D), lambda i: (i, 0, 0)),   # X: support rows only
                pl.BlockSpec((block_b, NS, N), lambda i: (i, 0, 0)),   # A: support rows only
                pl.BlockSpec((D, 1), lambda i: (0, 0)),                # proj weight
                pl.BlockSpec(memory_space=pltpu.MemorySpace.SMEM),     # proj bias (scalar)
                pl.BlockSpec((block_b, NS, NS), lambda i: (0, 0, 0)),  # centering matrix
                pl.BlockSpec((block_b, C, NS), lambda i: (0, 0, 0)),   # class one-hot
                pl.BlockSpec((N, S + Q), lambda i: (0, 0)),            # column fold matrix
            ],
            out_specs=pl.BlockSpec((block_b, C, K), lambda i: (i, 0, 0)),
        ),
        compiler_params=pltpu.CompilerParams(dimension_semantics=("parallel",)),
    )(X, A, w, b, cmat_b, mcls_b, mfold_j)

    pro = fused[:, :, :D]            # (B, C, D)   prototypes
    sup_A_new = fused[:, :, D:]      # (B, C, S+Q) folded weighted adjacency

    # Glue: assemble outputs exactly like the PyTorch code (assignment order matters:
    # the transpose overwrites the first C columns of every row).
    que = X[:, NS:]                  # (B, Q, D)
    que_A = A[:, NS:, NS:]           # (B, Q, Q)
    top = jnp.concatenate(
        [jnp.swapaxes(sup_A_new[:, :, :C], 1, 2), sup_A_new[:, :, C:]], axis=2)
    bottom = jnp.concatenate(
        [jnp.swapaxes(sup_A_new[:, :, C:], 1, 2), que_A], axis=2)
    A_new = jnp.concatenate([top, bottom], axis=1)      # (B, C+Q, C+Q)
    X_new = jnp.concatenate([pro, que], axis=1)         # (B, C+Q, D)
    return A_new, X_new


def classpro_ref(A, X, w, b, C, S, Q):
    """Pure-JAX reference mirroring the PyTorch forward, for validation."""
    B, N, D = X.shape
    NS = C * S
    sup = X[:, :NS].reshape(B, C, S, D)
    sup_A = A[:, :NS].reshape(B, C, S, N)
    que = X[:, NS:]
    que_A = A[:, NS:, NS:]
    sc = jax.nn.sigmoid((X @ w + b)[:, :NS].reshape(B, C, S, 1))
    sc = sc - sc.mean(axis=2, keepdims=True)
    pro = (sup * sc).sum(axis=2)                                   # (B, C, D)
    a_w = (sup_A * sc).sum(axis=2)                                 # (B, C, N)
    a_sup = a_w[:, :, :NS].reshape(B, C, C, S).sum(axis=2)         # (B, C, S)
    sup_A_new = jnp.concatenate([a_sup, a_w[:, :, NS:]], axis=2)   # (B, C, S+Q)
    top = jnp.concatenate(
        [jnp.swapaxes(sup_A_new[:, :, :C], 1, 2), sup_A_new[:, :, C:]], axis=2)
    bottom = jnp.concatenate(
        [jnp.swapaxes(sup_A_new[:, :, C:], 1, 2), que_A], axis=2)
    A_new = jnp.concatenate([top, bottom], axis=1)
    X_new = jnp.concatenate([pro, que], axis=1)
    return A_new, X_new


if __name__ == "__main__":
    # batch, num_classes, num_shots, num_queries, in_dim (batch large enough to
    # exercise batch-blocking: block_b=4, grid=2).
    B, C, S, Q, D = 8, 4, 4, 3, 32
    N = C * S + Q                           # 19 nodes

    key = jax.random.PRNGKey(0)
    kx, ka, kw, kb = jax.random.split(key, 4)
    X = jax.random.normal(kx, (B, N, D), dtype=jnp.float32)
    A = jax.random.uniform(ka, (B, N, N), dtype=jnp.float32)

    # Deterministic nn.Linear(in_dim, 1)-style init (uniform +-1/sqrt(in_dim)).
    bound = 1.0 / math.sqrt(D)
    w = jax.random.uniform(kw, (D, 1), minval=-bound, maxval=bound, dtype=jnp.float32)
    b = jax.random.uniform(kb, (1,), minval=-bound, maxval=bound, dtype=jnp.float32)

    A_out, X_out = classpro_forward(A, X, w, b, C, S, Q)
    jax.block_until_ready((A_out, X_out))

    A_ref, X_ref = classpro_ref(A, X, w, b, C, S, Q)
    assert A_out.shape == (B, C + Q, C + Q) and X_out.shape == (B, C + Q, D)
    assert np.allclose(np.asarray(A_out), np.asarray(A_ref), rtol=1e-4, atol=1e-5)
    assert np.allclose(np.asarray(X_out), np.asarray(X_ref), rtol=1e-4, atol=1e-5)

    print("KERNEL_OK")
</pallas_src>

<mosaic_0001>
module attributes {stable_mosaic.version = 11 : i64} {
  func.func @kernel(%arg0: i32, %arg1: memref<4x16x32xf32, #tpu.memory_space<vmem>>, %arg2: memref<4x16x19xf32, #tpu.memory_space<vmem>>, %arg3: memref<32x1xf32, #tpu.memory_space<vmem>>, %arg4: memref<1xf32, #tpu.memory_space<smem>>, %arg5: memref<4x16x16xf32, #tpu.memory_space<vmem>>, %arg6: memref<4x4x16xf32, #tpu.memory_space<vmem>>, %arg7: memref<19x7xf32, #tpu.memory_space<vmem>>, %arg8: memref<4x4x39xf32, #tpu.memory_space<vmem>>) attributes {dimension_semantics = [#tpu.dimension_semantics<parallel>], iteration_bounds = array<i64: 2>, scalar_prefetch = 0 : i64, scratch_operands = 0 : i64, tpu.core_type = #tpu.core_type<tc>, window_params = [{transform_indices = @transform_0, window_bounds = array<i64: 4, 16, 32>}, {transform_indices = @transform_1, window_bounds = array<i64: 4, 16, 19>}, {pipeline_mode = #tpu.pipeline_mode<synchronous>, transform_indices = @transform_2, window_bounds = array<i64: 32, 1>}, {transform_indices = @transform_3, window_bounds = array<i64: 1>}, {pipeline_mode = #tpu.pipeline_mode<synchronous>, transform_indices = @transform_4, window_bounds = array<i64: 4, 16, 16>}, {pipeline_mode = #tpu.pipeline_mode<synchronous>, transform_indices = @transform_5, window_bounds = array<i64: 4, 4, 16>}, {pipeline_mode = #tpu.pipeline_mode<synchronous>, transform_indices = @transform_6, window_bounds = array<i64: 19, 7>}, {transform_indices = @transform_7, window_bounds = array<i64: 4, 4, 39>}]} {
    %c0 = arith.constant 0 : index
    %c0_0 = arith.constant 0 : index
    %c0_1 = arith.constant 0 : index
    %0 = vector.load %arg1[%c0, %c0_0, %c0_1] : memref<4x16x32xf32, #tpu.memory_space<vmem>>, vector<4x16x32xf32>
    %c0_2 = arith.constant 0 : index
    %c0_3 = arith.constant 0 : index
    %c0_4 = arith.constant 0 : index
    %1 = vector.load %arg2[%c0_2, %c0_3, %c0_4] : memref<4x16x19xf32, #tpu.memory_space<vmem>>, vector<4x16x19xf32>
    %c0_5 = arith.constant 0 : index
    %c0_6 = arith.constant 0 : index
    %2 = vector.load %arg3[%c0_5, %c0_6] : memref<32x1xf32, #tpu.memory_space<vmem>>, vector<32x1xf32>
    %c0_7 = arith.constant 0 : index
    %3 = memref.load %arg4[%c0_7] : memref<1xf32, #tpu.memory_space<smem>>
    %c0_8 = arith.constant 0 : index
    %c0_9 = arith.constant 0 : index
    %c0_10 = arith.constant 0 : index
    %4 = vector.load %arg5[%c0_8, %c0_9, %c0_10] : memref<4x16x16xf32, #tpu.memory_space<vmem>>, vector<4x16x16xf32>
    %c0_11 = arith.constant 0 : index
    %c0_12 = arith.constant 0 : index
    %c0_13 = arith.constant 0 : index
    %5 = vector.load %arg6[%c0_11, %c0_12, %c0_13] : memref<4x4x16xf32, #tpu.memory_space<vmem>>, vector<4x4x16xf32>
    %c0_14 = arith.constant 0 : index
    %c0_15 = arith.constant 0 : index
    %6 = vector.load %arg7[%c0_14, %c0_15] : memref<19x7xf32, #tpu.memory_space<vmem>>, vector<19x7xf32>
    %cst = arith.constant dense<0.000000e+00> : vector<4x16x1xf32>
    %7 = tpu.matmul %0, %2, %cst {dimension_numbers = #tpu.dot_dimension_numbers<[2], [0], [0, 1], [1], [0, 0, 0, 1, 1, 1], [], []>} : vector<4x16x32xf32>, vector<32x1xf32>, vector<4x16x1xf32> -> vector<4x16x1xf32>
    %8 = vector.broadcast %3 : f32 to vector<4x16x1xf32>
    %9 = arith.addf %7, %8 : vector<4x16x1xf32>
    %10 = arith.negf %9 : vector<4x16x1xf32>
    %11 = math.exp %10 : vector<4x16x1xf32>
    %cst_16 = arith.constant 1.000000e+00 : f32
    %12 = vector.broadcast %cst_16 : f32 to vector<4x16x1xf32>
    %13 = arith.addf %12, %11 : vector<4x16x1xf32>
    %14 = arith.divf %12, %13 : vector<4x16x1xf32>
    %cst_17 = arith.constant dense<0.000000e+00> : vector<4x16x1xf32>
    %15 = tpu.matmul %4, %14, %cst_17 {dimension_numbers = #tpu.dot_dimension_numbers<[2], [1], [1], [2], [0, 0, 0, 1, 1, 2], [0], [0]>} : vector<4x16x16xf32>, vector<4x16x1xf32>, vector<4x16x1xf32> -> vector<4x16x1xf32>
    %cst_18 = arith.constant dense<0.000000e+00> : vector<4x16x7xf32>
    %16 = tpu.matmul %1, %6, %cst_18 {dimension_numbers = #tpu.dot_dimension_numbers<[2], [0], [0, 1], [1], [0, 0, 0, 1, 1, 1], [], []>} : vector<4x16x19xf32>, vector<19x7xf32>, vector<4x16x7xf32> -> vector<4x16x7xf32>
    %17 = tpu.concatenate %0, %16 in 2 : vector<4x16x32xf32>, vector<4x16x7xf32> -> vector<4x16x39xf32>
    %18 = vector.broadcast %15 : vector<4x16x1xf32> to vector<4x16x39xf32>
    %19 = arith.mulf %18, %17 : vector<4x16x39xf32>
    %cst_19 = arith.constant dense<0.000000e+00> : vector<4x4x39xf32>
    %20 = tpu.matmul %5, %19, %cst_19 {dimension_numbers = #tpu.dot_dimension_numbers<[2], [1], [1], [2], [0, 0, 0, 1, 1, 2], [0], [0]>} : vector<4x4x16xf32>, vector<4x16x39xf32>, vector<4x4x39xf32> -> vector<4x4x39xf32>
    %c0_20 = arith.constant 0 : index
    %c0_21 = arith.constant 0 : index
    %c0_22 = arith.constant 0 : index
    %21 = vector.load %arg8[%c0_20, %c0_21, %c0_22] : memref<4x4x39xf32, #tpu.memory_space<vmem>>, vector<4x4x39xf32>
    tpu.vector_store %arg8[%c0_20, %c0_21, %c0_22], %20 {strides = array<i32>} : memref<4x4x39xf32, #tpu.memory_space<vmem>>, vector<4x4x39xf32>,
    return
  }
  func.func @transform_0(%arg0: i32) -> (i32, i32, i32) {
    %c0_i32 = arith.constant 0 : i32
    %c0_i32_0 = arith.constant 0 : i32
    %c0_i32_1 = arith.constant 0 : i32
    return %arg0, %c0_i32, %c0_i32_0 : i32, i32, i32
  }
  func.func @transform_1(%arg0: i32) -> (i32, i32, i32) {
    %c0_i32 = arith.constant 0 : i32
    %c0_i32_0 = arith.constant 0 : i32
    %c0_i32_1 = arith.constant 0 : i32
    return %arg0, %c0_i32, %c0_i32_0 : i32, i32, i32
  }
  func.func @transform_2(%arg0: i32) -> (i32, i32) {
    %c0_i32 = arith.constant 0 : i32
    %c0_i32_0 = arith.constant 0 : i32
    %c0_i32_1 = arith.constant 0 : i32
    return %c0_i32, %c0_i32_0 : i32, i32
  }
  func.func @transform_3(%arg0: i32) -> i32 {
    %c0_i32 = arith.constant 0 : i32
    %c0_i32_0 = arith.constant 0 : i32
    return %c0_i32 : i32
  }
  func.func @transform_4(%arg0: i32) -> (i32, i32, i32) {
    %c0_i32 = arith.constant 0 : i32
    %c0_i32_0 = arith.constant 0 : i32
    %c0_i32_1 = arith.constant 0 : i32
    %c0_i32_2 = arith.constant 0 : i32
    return %c0_i32, %c0_i32_0, %c0_i32_1 : i32, i32, i32
  }
  func.func @transform_5(%arg0: i32) -> (i32, i32, i32) {
    %c0_i32 = arith.constant 0 : i32
    %c0_i32_0 = arith.constant 0 : i32
    %c0_i32_1 = arith.constant 0 : i32
    %c0_i32_2 = arith.constant 0 : i32
    return %c0_i32, %c0_i32_0, %c0_i32_1 : i32, i32, i32
  }
  func.func @transform_6(%arg0: i32) -> (i32, i32) {
    %c0_i32 = arith.constant 0 : i32
    %c0_i32_0 = arith.constant 0 : i32
    %c0_i32_1 = arith.constant 0 : i32
    return %c0_i32, %c0_i32_0 : i32, i32
  }
  func.func @transform_7(%arg0: i32) -> (i32, i32, i32) {
    %c0_i32 = arith.constant 0 : i32
    %c0_i32_0 = arith.constant 0 : i32
    %c0_i32_1 = arith.constant 0 : i32
    return %arg0, %c0_i32, %c0_i32_0 : i32, i32, i32
  }
}

</mosaic_0001>

<llo_original>
// kernel: tpu_custom_call.1
$region0: #{tpu_custom_call.1}
  #allocation0 [shape = 'u32[]', space=smem, size = 0x4, offset = 0x4, fixed_abs, tag = 'smem constant byte address 0x4 - core index']
  #allocation1 [shape = 'u32[72,128]{1,0:T(1,128)}', space=vmem, size = 0x9000, scoped, tag = 'internal scratch']
  #allocation2 [shape = 'f32[1]{0:T(128)S(6)}', space=smem, size = 0x200, scoped, tag = 'scoped memory for tpu_custom_call.1']
  %s0 = inlined_call_operand.vmem [shape: f32[8,19,32], index: 0, kind: input, shape index: {}]
  %s1 = inlined_call_operand.vmem [shape: f32[8,19,19], index: 1, kind: input, shape index: {}]
  %s2 = inlined_call_operand.vmem [shape: f32[32,1], index: 2, kind: input, shape index: {}]
  %s3 = inlined_call_operand.<no memory space> [shape: f32[1], index: 3, kind: input, shape index: {}]
  %s4 = inlined_call_operand.vmem [shape: f32[4,16,16], index: 4, kind: input, shape index: {}]
  %s5 = inlined_call_operand.vmem [shape: f32[4,4,16], index: 5, kind: input, shape index: {}]
  %s6 = inlined_call_operand.vmem [shape: f32[19,7], index: 6, kind: input, shape index: {}]
  %s7 = inlined_call_operand.hbm [shape: f32[8,4,39], index: 7, kind: output, shape index: {}]
  %s8 = sld [smem:[#allocation0]]
  $region137: #{tpu_custom_call.1} parent=0
    _
  %s10 = ssub.s32 1, %s8
  %s11 = scalar_select 0, %s10, %s8
  %12 = sst [smem:[#allocation2]] %s3
  $region1: #{tpu_custom_call.1} parent=0
    #allocation3 [shape = 'u8[65536]{0}', space=vmem, size = 0x10000, scoped, tag = 'input window, operand 0']
    #allocation4 [shape = 'u8[65536]{0}', space=vmem, size = 0x10000, scoped, tag = 'input window, operand 1']
    #allocation5 [shape = 'u8[16384]{0}', space=vmem, size = 0x4000, scoped, tag = 'output window, operand 0']
    #allocation6 [shape = 's32[2]{0}', space=sflag, size = 0x8, scoped, tag = 'scoped memory for tpu_custom_call.1']
    %13 = vsyncpa [#allocation6], 0
    %s14 = scalar_lea.sflag [#allocation6], 1
    %15 = vsyncpa %s14, 0
    loop: start=0, step=1, limit=4
    $region2: #{tpu_custom_call.1} parent=1 // loop_pre_header
      _
    $region3: #{tpu_custom_call.1} parent=1 // loop_header
      %s17 = sphi 0, %s21
      %p18 = scmp.ge.s32.totalorder %s17, 4
      %s27 = sphi 0, %s29
      %s30 = sphi 0, %s27
      %s31 = sphi 0, %s30
      %s47 = sphi 0, %s31
      %s53 = sphi 0, %s55
      %s56 = sphi 0, %s53
      %s57 = sphi 0, %s56
      %s73 = sphi 0, %s57
      %s77 = sphi 0, %s77
      %s79 = sphi 0, %s77
      %s80 = sphi 0, %s79
      %s94 = sphi 0, %s80
      %s98 = sphi 0, %s98
      %s100 = sphi 0, %s98
      %s101 = sphi 0, %s100
      %s115 = sphi 0, %s101
      %s119 = sphi 0, %s119
      %s121 = sphi 0, %s119
      %s122 = sphi 0, %s121
      %s136 = sphi 0, %s122
      %s140 = sphi 0, %s140
      %s142 = sphi 0, %s140
      %s143 = sphi 0, %s142
      %s157 = sphi 0, %s143
      %s161 = sphi 0, %s161
      %s163 = sphi 0, %s161
      %s164 = sphi 0, %s163
      %s178 = sphi 0, %s164
      %s184 = sphi 0, %s186
      %s187 = sphi 0, %s184
      %s188 = sphi 0, %s187
      %s204 = sphi 0, %s188
    $region4: #{tpu_custom_call.1} parent=1 // loop_header_branch
      %20 = sbr.rel (%p18) target = $region8
    $region5: #{tpu_custom_call.1} parent=1 // loop_body
      %s22 = ssub.s32 %s17, 1
      %s23 = ssub.s32 %s17, 2
      %s24 = sadd.s32 %s17, 1
      %s25 = ssub.s32 %s17, %s24
      %p26 = scmp.eq.s32.totalorder %s25, 0
      %s28 = sadd.s32 %s27, 1
      %s29 = scalar_select %p26, %s27, %s28
      %p32 = pneg %p26
      %p33 = scmp.eq.s32.totalorder %s17, 1
      %p34 = por %p32, %p33
      %p35 = scmp.ne.s32.totalorder %s27, %s30
      %p36 = scmp.eq.s32.totalorder %s17, 0
      %p37 = por %p35, %p36
      %p38 = scmp.ne.s32.totalorder %s27, %s30
      %p39 = scmp.eq.s32.totalorder %s22, 1
      %p40 = por %p38, %p39
      %p41 = scmp.ne.s32.totalorder %s30, %s31
      %p42 = scmp.eq.s32.totalorder %s22, 0
      %p43 = por %p41, %p42
      %p44 = scmp.ne.s32.totalorder %s30, %s31
      %p45 = scmp.eq.s32.totalorder %s23, 1
      %p46 = por %p44, %p45
      %p48 = scmp.ne.s32.totalorder %s31, %s47
      %p49 = scmp.eq.s32.totalorder %s23, 0
      %p50 = por %p48, %p49
      %s51 = ssub.s32 %s17, %s24
      %p52 = scmp.eq.s32.totalorder %s51, 0
      %s54 = sadd.s32 %s53, 1
      %s55 = scalar_select %p52, %s53, %s54
      %p58 = pneg %p52
      %p59 = scmp.eq.s32.totalorder %s17, 1
      %p60 = por %p58, %p59
      %p61 = scmp.ne.s32.totalorder %s53, %s56
      %p62 = scmp.eq.s32.totalorder %s17, 0
      %p63 = por %p61, %p62
      %p64 = scmp.ne.s32.totalorder %s53, %s56
      %p65 = scmp.eq.s32.totalorder %s22, 1
      %p66 = por %p64, %p65
      %p67 = scmp.ne.s32.totalorder %s56, %s57
      %p68 = scmp.eq.s32.totalorder %s22, 0
      %p69 = por %p67, %p68
      %p70 = scmp.ne.s32.totalorder %s56, %s57
      %p71 = scmp.eq.s32.totalorder %s23, 1
      %p72 = por %p70, %p71
      %p74 = scmp.ne.s32.totalorder %s57, %s73
      %p75 = scmp.eq.s32.totalorder %s23, 0
      %p76 = por %p74, %p75
      %s78 = sadd.s32 %s77, 1
      %p81 = scmp.eq.s32.totalorder %s17, 1
      %p82 = scmp.ne.s32.totalorder %s77, %s79
      %p83 = scmp.eq.s32.totalorder %s17, 0
      %p84 = por %p82, %p83
      %p85 = scmp.ne.s32.totalorder %s77, %s79
      %p86 = scmp.eq.s32.totalorder %s22, 1
      %p87 = por %p85, %p86
      %p88 = scmp.ne.s32.totalorder %s79, %s80
      %p89 = scmp.eq.s32.totalorder %s22, 0
      %p90 = por %p88, %p89
      %p91 = scmp.ne.s32.totalorder %s79, %s80
      %p92 = scmp.eq.s32.totalorder %s23, 1
      %p93 = por %p91, %p92
      %p95 = scmp.ne.s32.totalorder %s80, %s94
      %p96 = scmp.eq.s32.totalorder %s23, 0
      %p97 = por %p95, %p96
      %s99 = sadd.s32 %s98, 1
      %p102 = scmp.eq.s32.totalorder %s17, 1
      %p103 = scmp.ne.s32.totalorder %s98, %s100
      %p104 = scmp.eq.s32.totalorder %s17, 0
      %p105 = por %p103, %p104
      %p106 = scmp.ne.s32.totalorder %s98, %s100
      %p107 = scmp.eq.s32.totalorder %s22, 1
      %p108 = por %p106, %p107
      %p109 = scmp.ne.s32.totalorder %s100, %s101
      %p110 = scmp.eq.s32.totalorder %s22, 0
      %p111 = por %p109, %p110
      %p112 = scmp.ne.s32.totalorder %s100, %s101
      %p113 = scmp.eq.s32.totalorder %s23, 1
      %p114 = por %p112, %p113
      %p116 = scmp.ne.s32.totalorder %s101, %s115
      %p117 = scmp.eq.s32.totalorder %s23, 0
      %p118 = por %p116, %p117
      %s120 = sadd.s32 %s119, 1
      %p123 = scmp.eq.s32.totalorder %s17, 1
      %p124 = scmp.ne.s32.totalorder %s119, %s121
      %p125 = scmp.eq.s32.totalorder %s17, 0
      %p126 = por %p124, %p125
      %p127 = scmp.ne.s32.totalorder %s119, %s121
      %p128 = scmp.eq.s32.totalorder %s22, 1
      %p129 = por %p127, %p128
      %p130 = scmp.ne.s32.totalorder %s121, %s122
      %p131 = scmp.eq.s32.totalorder %s22, 0
      %p132 = por %p130, %p131
      %p133 = scmp.ne.s32.totalorder %s121, %s122
      %p134 = scmp.eq.s32.totalorder %s23, 1
      %p135 = por %p133, %p134
      %p137 = scmp.ne.s32.totalorder %s122, %s136
      %p138 = scmp.eq.s32.totalorder %s23, 0
      %p139 = por %p137, %p138
      %s141 = sadd.s32 %s140, 1
      %p144 = scmp.eq.s32.totalorder %s17, 1
      %p145 = scmp.ne.s32.totalorder %s140, %s142
      %p146 = scmp.eq.s32.totalorder %s17, 0
      %p147 = por %p145, %p146
      %p148 = scmp.ne.s32.totalorder %s140, %s142
      %p149 = scmp.eq.s32.totalorder %s22, 1
      %p150 = por %p148, %p149
      %p151 = scmp.ne.s32.totalorder %s142, %s143
      %p152 = scmp.eq.s32.totalorder %s22, 0
      %p153 = por %p151, %p152
      %p154 = scmp.ne.s32.totalorder %s142, %s143
      %p155 = scmp.eq.s32.totalorder %s23, 1
      %p156 = por %p154, %p155
      %p158 = scmp.ne.s32.totalorder %s143, %s157
      %p159 = scmp.eq.s32.totalorder %s23, 0
      %p160 = por %p158, %p159
      %s162 = sadd.s32 %s161, 1
      %p165 = scmp.eq.s32.totalorder %s17, 1
      %p166 = scmp.ne.s32.totalorder %s161, %s163
      %p167 = scmp.eq.s32.totalorder %s17, 0
      %p168 = por %p166, %p167
      %p169 = scmp.ne.s32.totalorder %s161, %s163
      %p170 = scmp.eq.s32.totalorder %s22, 1
      %p171 = por %p169, %p170
      %p172 = scmp.ne.s32.totalorder %s163, %s164
      %p173 = scmp.eq.s32.totalorder %s22, 0
      %p174 = por %p172, %p173
      %p175 = scmp.ne.s32.totalorder %s163, %s164
      %p176 = scmp.eq.s32.totalorder %s23, 1
      %p177 = por %p175, %p176
      %p179 = scmp.ne.s32.totalorder %s164, %s178
      %p180 = scmp.eq.s32.totalorder %s23, 0
      %p181 = por %p179, %p180
      %s182 = ssub.s32 %s17, %s24
      %p183 = scmp.eq.s32.totalorder %s182, 0
      %s185 = sadd.s32 %s184, 1
      %s186 = scalar_select %p183, %s184, %s185
      %p189 = pneg %p183
      %p190 = scmp.eq.s32.totalorder %s17, 1
      %p191 = por %p189, %p190
      %p192 = scmp.ne.s32.totalorder %s184, %s187
      %p193 = scmp.eq.s32.totalorder %s17, 0
      %p194 = por %p192, %p193
      %p195 = scmp.ne.s32.totalorder %s184, %s187
      %p196 = scmp.eq.s32.totalorder %s22, 1
      %p197 = por %p195, %p196
      %p198 = scmp.ne.s32.totalorder %s187, %s188
      %p199 = scmp.eq.s32.totalorder %s22, 0
      %p200 = por %p198, %p199
      %p201 = scmp.ne.s32.totalorder %s187, %s188
      %p202 = scmp.eq.s32.totalorder %s23, 1
      %p203 = por %p201, %p202
      %p205 = scmp.ne.s32.totalorder %s188, %s204
      %p206 = scmp.eq.s32.totalorder %s23, 0
      %p207 = por %p205, %p206
      %p208 = scmp.le.s32.totalorder 1, %s17
      %p209 = scmp.lt.s32.totalorder %s17, 3
      %p210 = pnand %p208, %p209
      %p211 = pneg %p210
      // Predicated region
      $region9: #{tpu_custom_call.1} parent=5 // pred_check
        _
      $region10: #{tpu_custom_call.1} parent=5 // pred_check_branch
        %213 = sbr.rel (%p210) target = $region12
      $region11: #{tpu_custom_call.1} parent=5 // pred_region
        %s214 = ssub.s32 %s17, 1
        // Predicated region
        $region13: #{tpu_custom_call.1} parent=11 // pred_check
          %p215 = pneg %p90
        $region14: #{tpu_custom_call.1} parent=11 // pred_check_branch
          %217 = sbr.rel (%p215) target = $region16
        $region15: #{tpu_custom_call.1} parent=11 // pred_region
          _
        $region16: #{tpu_custom_call.1} parent=11 // pred_fallthru
          _
        // Predicated region
        $region17: #{tpu_custom_call.1} parent=11 // pred_check
          %p218 = pneg %p111
        $region18: #{tpu_custom_call.1} parent=11 // pred_check_branch
          %220 = sbr.rel (%p218) target = $region20
        $region19: #{tpu_custom_call.1} parent=11 // pred_region
          _
        $region20: #{tpu_custom_call.1} parent=11 // pred_fallthru
          _
        // Predicated region
        $region21: #{tpu_custom_call.1} parent=11 // pred_check
          %p221 = pneg %p132
        $region22: #{tpu_custom_call.1} parent=11 // pred_check_branch
          %223 = sbr.rel (%p221) target = $region24
        $region23: #{tpu_custom_call.1} parent=11 // pred_region
          _
        $region24: #{tpu_custom_call.1} parent=11 // pred_fallthru
          _
        // Predicated region
        $region25: #{tpu_custom_call.1} parent=11 // pred_check
          %p224 = pneg %p153
        $region26: #{tpu_custom_call.1} parent=11 // pred_check_branch
          %226 = sbr.rel (%p224) target = $region28
        $region27: #{tpu_custom_call.1} parent=11 // pred_region
          _
        $region28: #{tpu_custom_call.1} parent=11 // pred_fallthru
          _
        // Predicated region
        $region29: #{tpu_custom_call.1} parent=11 // pred_check
          %p227 = pneg %p174
        $region30: #{tpu_custom_call.1} parent=11 // pred_check_branch
          %229 = sbr.rel (%p227) target = $region32
        $region31: #{tpu_custom_call.1} parent=11 // pred_region
          _
        $region32: #{tpu_custom_call.1} parent=11 // pred_fallthru
          _
      $region12: #{tpu_custom_call.1} parent=5 // pred_fallthru
        _
      %p230 = scmp.lt.s32.totalorder %s17, 2
      // Predicated region
      $region33: #{tpu_custom_call.1} parent=5 // pred_check
        %p231 = pneg %p230
      $region34: #{tpu_custom_call.1} parent=5 // pred_check_branch
        %233 = sbr.rel (%p231) target = $region36
      $region35: #{tpu_custom_call.1} parent=5 // pred_region
        // Predicated region
        $region37: #{tpu_custom_call.1} parent=35 // pred_check
          %p234 = pneg %p37
        $region38: #{tpu_custom_call.1} parent=35 // pred_check_branch
          %236 = sbr.rel (%p234) target = $region40
        $region39: #{tpu_custom_call.1} parent=35 // pred_region
          %s237 = sand.u32 %s27, 1
          %s238 = sand.u32 %s27, 1
          %s239 = smul.addr %s238, 64
          %s240 = scalar_lea.vmem [#allocation3], %s239
          %s241 = smul.u32 4, %s17
          %s242 = smul.addr %s241, 3
          %s243 = smul.addr %s242, 8
          %s244 = scalar_lea.vmem %s0, %s243
          // Predicated region
          $region41: #{tpu_custom_call.1} parent=39 // pred_check
            _
          $region42: #{tpu_custom_call.1} parent=39 // pred_check_branch
            %246 = sbr.rel (0) target = $region44
          $region43: #{tpu_custom_call.1} parent=39 // pred_region
            // Predicated region
            $region45: #{tpu_custom_call.1} parent=43 // pred_check
              _
            $region46: #{tpu_custom_call.1} parent=43 // pred_check_branch
              %248 = sbr.rel (0) target = $region48
            $region47: #{tpu_custom_call.1} parent=43 // pred_region
              // Predicated region
              $region60: #{tpu_custom_call.1} parent=47 // pred_check
                _
              $region61: #{tpu_custom_call.1} parent=47 // pred_check_branch
                %278 = sbr.rel (0) target = $region63
              $region62: #{tpu_custom_call.1} parent=47 // pred_region
                loop: start=0, step=1, limit=1
                $region64: #{tpu_custom_call.1} parent=62 // loop_pre_header
                  _
                $region65: #{tpu_custom_call.1} parent=62 // loop_header
                  %s280 = sphi 0, %s284
                  %p281 = scmp.ge.s32.totalorder %s280, 1
                  %s285 = sphi %s244, %s244
                  %s286 = sphi %s240, %s240
                $region66: #{tpu_custom_call.1} parent=62 // loop_header_branch
                  %283 = sbr.rel (%p281) target = $region70
                $region67: #{tpu_custom_call.1} parent=62 // loop_body
                  %v287 = vld [vmem:[%s285] sm:$0xff]
                  %288 = vst [vmem:[%s286] sm:$0xff] %v287
                  %v289 = vld [vmem:[%s285 + $0x8] sm:$0xff]
                  %290 = vst [vmem:[%s286 + $0x8] sm:$0xff] %v289
                  %v291 = vld [vmem:[%s285 + $0x18] sm:$0xff]
                  %292 = vst [vmem:[%s286 + $0x10] sm:$0xff] %v291
                  %v293 = vld [vmem:[%s285 + $0x20] sm:$0xff]
                  %294 = vst [vmem:[%s286 + $0x18] sm:$0xff] %v293
                  %v295 = vld [vmem:[%s285 + $0x30] sm:$0xff]
                  %296 = vst [vmem:[%s286 + $0x20] sm:$0xff] %v295
                  %v297 = vld [vmem:[%s285 + $0x38] sm:$0xff]
                  %298 = vst [vmem:[%s286 + $0x28] sm:$0xff] %v297
                  %v299 = vld [vmem:[%s285 + $0x48] sm:$0xff]
                  %300 = vst [vmem:[%s286 + $0x30] sm:$0xff] %v299
                  %v301 = vld [vmem:[%s285 + $0x50] sm:$0xff]
                  %302 = vst [vmem:[%s286 + $0x38] sm:$0xff] %v301
                $region68: #{tpu_custom_call.1} parent=62 // loop_footer
                  %s284 = sadd.s32 1, %s280
                $region69: #{tpu_custom_call.1} parent=62 // loop_footer_branch
                  %279 = sbr.rel target = $region65
                $region70: #{tpu_custom_call.1} parent=62 // loop_exit
                  _
              $region63: #{tpu_custom_call.1} parent=47 // pred_fallthru
                _
              // Predicated region
              $region71: #{tpu_custom_call.1} parent=47 // pred_check
                _
              $region72: #{tpu_custom_call.1} parent=47 // pred_check_branch
                %304 = sbr.rel target = $region74
              $region73: #{tpu_custom_call.1} parent=47 // pred_region
                _
              $region74: #{tpu_custom_call.1} parent=47 // pred_fallthru
                _
            $region48: #{tpu_custom_call.1} parent=43 // pred_fallthru
              _
            // Predicated region
            $region49: #{tpu_custom_call.1} parent=43 // pred_check
              _
            $region50: #{tpu_custom_call.1} parent=43 // pred_check_branch
              %250 = sbr.rel target = $region52
            $region51: #{tpu_custom_call.1} parent=43 // pred_region
              %s252 = ssub.s32 256, 1
              loop: start=0, step=1, limit=1
              $region53: #{tpu_custom_call.1} parent=51 // loop_pre_header
                _
              $region54: #{tpu_custom_call.1} parent=51 // loop_header
                %s254 = sphi 0, %s258
                %p255 = scmp.ge.s32.totalorder %s254, 1
                %s259 = sphi %s244, %s244
                %s260 = sphi %s240, %s240
              $region55: #{tpu_custom_call.1} parent=51 // loop_header_branch
                %257 = sbr.rel (%p255) target = $region59
              $region56: #{tpu_custom_call.1} parent=51 // loop_body
                %v261 = vld [vmem:[%s259] sm:%s252]
                %262 = vst [vmem:[%s260] sm:%s252] %v261
                %v263 = vld [vmem:[%s259 + $0x8] sm:%s252]
                %264 = vst [vmem:[%s260 + $0x8] sm:%s252] %v263
                %v265 = vld [vmem:[%s259 + $0x18] sm:%s252]
                %266 = vst [vmem:[%s260 + $0x10] sm:%s252] %v265
                %v267 = vld [vmem:[%s259 + $0x20] sm:%s252]
                %268 = vst [vmem:[%s260 + $0x18] sm:%s252] %v267
                %v269 = vld [vmem:[%s259 + $0x30] sm:%s252]
                %270 = vst [vmem:[%s260 + $0x20] sm:%s252] %v269
                %v271 = vld [vmem:[%s259 + $0x38] sm:%s252]
                %272 = vst [vmem:[%s260 + $0x28] sm:%s252] %v271
                %v273 = vld [vmem:[%s259 + $0x48] sm:%s252]
                %274 = vst [vmem:[%s260 + $0x30] sm:%s252] %v273
                %v275 = vld [vmem:[%s259 + $0x50] sm:%s252]
                %276 = vst [vmem:[%s260 + $0x38] sm:%s252] %v275
              $region57: #{tpu_custom_call.1} parent=51 // loop_footer
                %s258 = sadd.s32 1, %s254
              $region58: #{tpu_custom_call.1} parent=51 // loop_footer_branch
                %253 = sbr.rel target = $region54
              $region59: #{tpu_custom_call.1} parent=51 // loop_exit
                _
            $region52: #{tpu_custom_call.1} parent=43 // pred_fallthru
              _
          $region44: #{tpu_custom_call.1} parent=39 // pred_fallthru
            _
          %305 = vnop
        $region40: #{tpu_custom_call.1} parent=35 // pred_fallthru
          _
        // Predicated region
        $region75: #{tpu_custom_call.1} parent=35 // pred_check
          %p306 = pneg %p63
        $region76: #{tpu_custom_call.1} parent=35 // pred_check_branch
          %308 = sbr.rel (%p306) target = $region78
        $region77: #{tpu_custom_call.1} parent=35 // pred_region
          %s309 = sand.u32 %s53, 1
          %s310 = sand.u32 %s53, 1
          %s311 = smul.addr %s310, 64
          %s312 = scalar_lea.vmem [#allocation4], %s311
          %s313 = smul.u32 4, %s17
          %s314 = smul.addr %s313, 3
          %s315 = smul.addr %s314, 8
          %s316 = scalar_lea.vmem %s1, %s315
          // Predicated region
          $region79: #{tpu_custom_call.1} parent=77 // pred_check
            _
          $region80: #{tpu_custom_call.1} parent=77 // pred_check_branch
            %318 = sbr.rel (0) target = $region82
          $region81: #{tpu_custom_call.1} parent=77 // pred_region
            // Predicated region
            $region83: #{tpu_custom_call.1} parent=81 // pred_check
              _
            $region84: #{tpu_custom_call.1} parent=81 // pred_check_branch
              %320 = sbr.rel (0) target = $region86
            $region85: #{tpu_custom_call.1} parent=81 // pred_region
              // Predicated region
              $region98: #{tpu_custom_call.1} parent=85 // pred_check
                _
              $region99: #{tpu_custom_call.1} parent=85 // pred_check_branch
                %350 = sbr.rel (0) target = $region101
              $region100: #{tpu_custom_call.1} parent=85 // pred_region
                loop: start=0, step=1, limit=1
                $region102: #{tpu_custom_call.1} parent=100 // loop_pre_header
                  _
                $region103: #{tpu_custom_call.1} parent=100 // loop_header
                  %s352 = sphi 0, %s356
                  %p353 = scmp.ge.s32.totalorder %s352, 1
                  %s357 = sphi %s316, %s316
                  %s358 = sphi %s312, %s312
                $region104: #{tpu_custom_call.1} parent=100 // loop_header_branch
                  %355 = sbr.rel (%p353) target = $region108
                $region105: #{tpu_custom_call.1} parent=100 // loop_body
                  %v359 = vld [vmem:[%s357] sm:$0xff]
                  %360 = vst [vmem:[%s358] sm:$0xff] %v359
                  %v361 = vld [vmem:[%s357 + $0x8] sm:$0xff]
                  %362 = vst [vmem:[%s358 + $0x8] sm:$0xff] %v361
                  %v363 = vld [vmem:[%s357 + $0x18] sm:$0xff]
                  %364 = vst [vmem:[%s358 + $0x10] sm:$0xff] %v363
                  %v365 = vld [vmem:[%s357 + $0x20] sm:$0xff]
                  %366 = vst [vmem:[%s358 + $0x18] sm:$0xff] %v365
                  %v367 = vld [vmem:[%s357 + $0x30] sm:$0xff]
                  %368 = vst [vmem:[%s358 + $0x20] sm:$0xff] %v367
                  %v369 = vld [vmem:[%s357 + $0x38] sm:$0xff]
                  %370 = vst [vmem:[%s358 + $0x28] sm:$0xff] %v369
                  %v371 = vld [vmem:[%s357 + $0x48] sm:$0xff]
                  %372 = vst [vmem:[%s358 + $0x30] sm:$0xff] %v371
                  %v373 = vld [vmem:[%s357 + $0x50] sm:$0xff]
                  %374 = vst [vmem:[%s358 + $0x38] sm:$0xff] %v373
                $region106: #{tpu_custom_call.1} parent=100 // loop_footer
                  %s356 = sadd.s32 1, %s352
                $region107: #{tpu_custom_call.1} parent=100 // loop_footer_branch
                  %351 = sbr.rel target = $region103
                $region108: #{tpu_custom_call.1} parent=100 // loop_exit
                  _
              $region101: #{tpu_custom_call.1} parent=85 // pred_fallthru
                _
              // Predicated region
              $region109: #{tpu_custom_call.1} parent=85 // pred_check
                _
              $region110: #{tpu_custom_call.1} parent=85 // pred_check_branch
                %376 = sbr.rel target = $region112
              $region111: #{tpu_custom_call.1} parent=85 // pred_region
                _
              $region112: #{tpu_custom_call.1} parent=85 // pred_fallthru
                _
            $region86: #{tpu_custom_call.1} parent=81 // pred_fallthru
              _
            // Predicated region
            $region87: #{tpu_custom_call.1} parent=81 // pred_check
              _
            $region88: #{tpu_custom_call.1} parent=81 // pred_check_branch
              %322 = sbr.rel target = $region90
            $region89: #{tpu_custom_call.1} parent=81 // pred_region
              %s324 = ssub.s32 256, 1
              loop: start=0, step=1, limit=1
              $region91: #{tpu_custom_call.1} parent=89 // loop_pre_header
                _
              $region92: #{tpu_custom_call.1} parent=89 // loop_header
                %s326 = sphi 0, %s330
                %p327 = scmp.ge.s32.totalorder %s326, 1
                %s331 = sphi %s316, %s316
                %s332 = sphi %s312, %s312
              $region93: #{tpu_custom_call.1} parent=89 // loop_header_branch
                %329 = sbr.rel (%p327) target = $region97
              $region94: #{tpu_custom_call.1} parent=89 // loop_body
                %v333 = vld [vmem:[%s331] sm:%s324]
                %334 = vst [vmem:[%s332] sm:%s324] %v333
                %v335 = vld [vmem:[%s331 + $0x8] sm:%s324]
                %336 = vst [vmem:[%s332 + $0x8] sm:%s324] %v335
                %v337 = vld [vmem:[%s331 + $0x18] sm:%s324]
                %338 = vst [vmem:[%s332 + $0x10] sm:%s324] %v337
                %v339 = vld [vmem:[%s331 + $0x20] sm:%s324]
                %340 = vst [vmem:[%s332 + $0x18] sm:%s324] %v339
                %v341 = vld [vmem:[%s331 + $0x30] sm:%s324]
                %342 = vst [vmem:[%s332 + $0x20] sm:%s324] %v341
                %v343 = vld [vmem:[%s331 + $0x38] sm:%s324]
                %344 = vst [vmem:[%s332 + $0x28] sm:%s324] %v343
                %v345 = vld [vmem:[%s331 + $0x48] sm:%s324]
                %346 = vst [vmem:[%s332 + $0x30] sm:%s324] %v345
                %v347 = vld [vmem:[%s331 + $0x50] sm:%s324]
                %348 = vst [vmem:[%s332 + $0x38] sm:%s324] %v347
              $region95: #{tpu_custom_call.1} parent=89 // loop_footer
                %s330 = sadd.s32 1, %s326
              $region96: #{tpu_custom_call.1} parent=89 // loop_footer_branch
                %325 = sbr.rel target = $region92
              $region97: #{tpu_custom_call.1} parent=89 // loop_exit
                _
            $region90: #{tpu_custom_call.1} parent=81 // pred_fallthru
              _
          $region82: #{tpu_custom_call.1} parent=77 // pred_fallthru
            _
          %377 = vnop
        $region78: #{tpu_custom_call.1} parent=35 // pred_fallthru
          _
      $region36: #{tpu_custom_call.1} parent=5 // pred_fallthru
        _
      %p378 = scmp.le.s32.totalorder 1, %s17
      %p379 = scmp.lt.s32.totalorder %s17, 3
      %p380 = pnand %p378, %p379
      %p381 = pneg %p380
      // Predicated region
      $region113: #{tpu_custom_call.1} parent=5 // pred_check
        _
      $region114: #{tpu_custom_call.1} parent=5 // pred_check_branch
        %383 = sbr.rel (%p380) target = $region116
      $region115: #{tpu_custom_call.1} parent=5 // pred_region
        %s384 = ssub.s32 %s17, 1
        %s385 = sand.u32 %s30, 1
        %s386 = sand.u32 %s30, 1
        %s387 = smul.addr %s386, 64
        %s388 = scalar_lea.vmem [#allocation3], %s387
        // Predicated region
        $region117: #{tpu_custom_call.1} parent=115 // pred_check
          %p389 = pneg %p43
        $region118: #{tpu_custom_call.1} parent=115 // pred_check_branch
          %391 = sbr.rel (%p389) target = $region120
        $region119: #{tpu_custom_call.1} parent=115 // pred_region
          _
        $region120: #{tpu_custom_call.1} parent=115 // pred_fallthru
          _
        %s392 = sand.u32 %s56, 1
        %s393 = sand.u32 %s56, 1
        %s394 = smul.addr %s393, 64
        %s395 = scalar_lea.vmem [#allocation4], %s394
        // Predicated region
        $region121: #{tpu_custom_call.1} parent=115 // pred_check
          %p396 = pneg %p69
        $region122: #{tpu_custom_call.1} parent=115 // pred_check_branch
          %398 = sbr.rel (%p396) target = $region124
        $region123: #{tpu_custom_call.1} parent=115 // pred_region
          _
        $region124: #{tpu_custom_call.1} parent=115 // pred_fallthru
          _
        %s399 = sand.u32 %s30, 1
        %s400 = sand.u32 %s30, 1
        %s401 = smul.addr %s400, 64
        %s402 = scalar_lea.vmem [#allocation3], %s401
        %p403 = pneg %p43
        %p404 = pneg %p40
        %s405 = sand.u32 %s56, 1
        %s406 = sand.u32 %s56, 1
        %s407 = smul.addr %s406, 64
        %s408 = scalar_lea.vmem [#allocation4], %s407
        %p409 = pneg %p69
        %p410 = pneg %p66
        %p411 = pneg %p90
        %p412 = pneg %p87
        %p413 = pneg %p111
        %p414 = pneg %p108
        %p415 = pneg %p132
        %p416 = pneg %p129
        %p417 = pneg %p153
        %p418 = pneg %p150
        %p419 = pneg %p174
        %p420 = pneg %p171
        %p421 = pneg %p200
        %p422 = pneg %p197
        %s423 = sand.u32 %s187, 1
        %s424 = scalar_lea.sflag [#allocation6], %s423
        %s425 = sand.u32 %s187, 1
        %s426 = smul.addr %s425, 16
        %s427 = scalar_lea.vmem [#allocation5], %s426
        %s428 = smul.u32 4, %s22
        %s429 = smul.u32 4, %s22
        %s430 = smul.u32 4, %s22
        %v431 = vld [vmem:[%s388] sm:$0xff]
        %v432 = vld [vmem:[%s388 + $0x8] sm:$0xff]
        %v433 = vld [vmem:[%s388 + $0x10] sm:$0xff]
        %v434 = vld [vmem:[%s388 + $0x18] sm:$0xff]
        %v435 = vld [vmem:[%s388 + $0x20] sm:$0xff]
        %v436 = vld [vmem:[%s388 + $0x28] sm:$0xff]
        %v437 = vld [vmem:[%s388 + $0x30] sm:$0xff]
        %v438 = vld [vmem:[%s388 + $0x38] sm:$0xff]
        %v439 = vld [vmem:[%s395] sm:$0xff]
        %v440 = vld [vmem:[%s395 + $0x8] sm:$0xff]
        %v441 = vld [vmem:[%s395 + $0x10] sm:$0xff]
        %v442 = vld [vmem:[%s395 + $0x18] sm:$0xff]
        %v443 = vld [vmem:[%s395 + $0x20] sm:$0xff]
        %v444 = vld [vmem:[%s395 + $0x28] sm:$0xff]
        %v445 = vld [vmem:[%s395 + $0x30] sm:$0xff]
        %v446 = vld [vmem:[%s395 + $0x38] sm:$0xff]
        %v447 = vld [vmem:[%s2] sm:$0xff]
        %v448 = vld [vmem:[%s2 + $0x8] sm:$0xff]
        %v449 = vld [vmem:[%s2 + $0x10] sm:$0xff]
        %v450 = vld [vmem:[%s2 + $0x18] sm:$0xff]
        %s451 = sld [smem:[#allocation2]]
        %v452 = vld [vmem:[%s4] sm:$0xff]
        %v453 = vld [vmem:[%s4 + $0x8] sm:$0xff]
        %v454 = vld [vmem:[%s4 + $0x10] sm:$0xff]
        %v455 = vld [vmem:[%s4 + $0x18] sm:$0xff]
        %v456 = vld [vmem:[%s4 + $0x20] sm:$0xff]
        %v457 = vld [vmem:[%s4 + $0x28] sm:$0xff]
        %v458 = vld [vmem:[%s4 + $0x30] sm:$0xff]
        %v459 = vld [vmem:[%s4 + $0x38] sm:$0xff]
        %v460 = vld [vmem:[%s5] sm:$0xf]
        %v461 = vld [vmem:[%s5 + $0x4] sm:$0xf]
        %v462 = vld [vmem:[%s5 + $0x8] sm:$0xf]
        %v463 = vld [vmem:[%s5 + $0xc] sm:$0xf]
        %v464 = vld [vmem:[%s6] sm:$0xff]
        %v465 = vld [vmem:[%s6 + $0x8] sm:$0xff]
        %v466 = vld [vmem:[%s6 + $0x10] sm:$0x7]
        %v467 = vstv %s451
        %vm468 = vcmask 261120
        %v470 = vsel %vm468, %v431, 0
        %v473 = vsel %vm468, %v432, 0
        %v476 = vsel %vm468, %v433, 0
        %v479 = vsel %vm468, %v434, 0
        %v482 = vsel %vm468, %v435, 0
        %v485 = vsel %vm468, %v436, 0
        %v488 = vsel %vm468, %v437, 0
        %v491 = vsel %vm468, %v438, 0
        %493 = vmatpush.msra.mxu0 0.0
        %494 = vmatpush.msra.mxu0 0.0
        %495 = vmatpush.msra.mxu0 0.0
        %496 = vmatpush.msra.mxu0 0.0
        %497 = vmatpush.msra.mxu0 0.0
        %498 = vmatpush.msra.mxu0 0.0
        %499 = vmatpush.msra.mxu0 0.0
        %500 = vmatpush.msra.mxu0 0.0
        %501 = vmatpush.msra.mxu0 0.0
        %502 = vmatpush.msra.mxu0 0.0
        %503 = vmatpush.msra.mxu0 0.0
        %504 = vmatpush.msra.mxu0 0.0
        %505 = vmatpush.msra.mxu0 %v450
        %506 = vmatpush.msra.mxu0 %v449
        %507 = vmatpush.msra.mxu0 %v448
        %508 = vmatpush.msra.mxu0 %v447
        %509 = vmatmul.f32.gmra.mxu0 %v470
        %v510 = vpop.f32.mrf.mxu0
        %v511 = vadd.f32 %v467, %v510
        %512 = vmatmul.f32.gmra.mxu0 %v473
        %v513 = vpop.f32.mrf.mxu0
        %v514 = vadd.f32 %v467, %v513
        %515 = vmatmul.f32.gmra.mxu0 %v476
        %v516 = vpop.f32.mrf.mxu0
        %v517 = vadd.f32 %v467, %v516
        %518 = vmatmul.f32.gmra.mxu0 %v479
        %v519 = vpop.f32.mrf.mxu0
        %v520 = vadd.f32 %v467, %v519
        %521 = vmatmul.f32.gmra.mxu0 %v482
        %v522 = vpop.f32.mrf.mxu0
        %v523 = vadd.f32 %v467, %v522
        %524 = vmatmul.f32.gmra.mxu0 %v485
        %v525 = vpop.f32.mrf.mxu0
        %v526 = vadd.f32 %v467, %v525
        %527 = vmatmul.f32.gmra.mxu0 %v488
        %v528 = vpop.f32.mrf.mxu0
        %v529 = vadd.f32 %v467, %v528
        %530 = vmatmul.f32.gmra.mxu0 %v491
        %v531 = vpop.f32.mrf.mxu0
        %v532 = vadd.f32 %v467, %v531
        %533 = vdwg.mxu0
        %v534 = vxor.u32 %v511, 2147483648
        %v535 = vxor.u32 %v514, 2147483648
        %v536 = vxor.u32 %v517, 2147483648
        %v537 = vxor.u32 %v520, 2147483648
        %v538 = vxor.u32 %v523, 2147483648
        %v539 = vxor.u32 %v526, 2147483648
        %v540 = vxor.u32 %v529, 2147483648
        %v541 = vxor.u32 %v532, 2147483648
        %v542 = vmul.f32 %v534, 1.442695
        %v543 = vpow.pop %v542
        %v544 = vmul.f32 %v535, 1.442695
        %v545 = vpow.pop %v544
        %v546 = vmul.f32 %v536, 1.442695
        %v547 = vpow.pop %v546
        %v548 = vmul.f32 %v537, 1.442695
        %v549 = vpow.pop %v548
        %v550 = vmul.f32 %v538, 1.442695
        %v551 = vpow.pop %v550
        %v552 = vmul.f32 %v539, 1.442695
        %v553 = vpow.pop %v552
        %v554 = vmul.f32 %v540, 1.442695
        %v555 = vpow.pop %v554
        %v556 = vmul.f32 %v541, 1.442695
        %v557 = vpow.pop %v556
        %v558 = vadd.f32 %v543, 1.0
        %v559 = vadd.f32 %v545, 1.0
        %v560 = vadd.f32 %v547, 1.0
        %v561 = vadd.f32 %v549, 1.0
        %v562 = vadd.f32 %v551, 1.0
        %v563 = vadd.f32 %v553, 1.0
        %v564 = vadd.f32 %v555, 1.0
        %v565 = vadd.f32 %v557, 1.0
        %v566 = vrcp.pop %v558
        %v567 = vmul.f32 %v558, %v566
        %v568 = vsub.f32 1.0, %v567
        %v569 = vmul.f32 %v566, %v568
        %v570 = vadd.f32 %v566, %v569
        %vm571 = vweird.f32 %v558
        %vm572 = vweird.f32 %v566
        %vm573 = vmor %vm571, %vm572
        %v574 = vsel %vm573, %v566, %v570
        %v575 = vand.u32 2147483647, %v558
        %vm576 = vcmp.eq.f32.partialorder %v575, 8.507059e+37
        %v577 = vand.u32 %v558, 2147483648
        %v578 = vor.u32 1.1754944e-38, %v577
        %v579 = vsel %vm576, %v578, %v574
        %v580 = vmul.f32 1.0, %v579
        %v581 = vrcp.pop %v559
        %v582 = vmul.f32 %v559, %v581
        %v583 = vsub.f32 1.0, %v582
        %v584 = vmul.f32 %v581, %v583
        %v585 = vadd.f32 %v581, %v584
        %vm586 = vweird.f32 %v559
        %vm587 = vweird.f32 %v581
        %vm588 = vmor %vm586, %vm587
        %v589 = vsel %vm588, %v581, %v585
        %v590 = vand.u32 2147483647, %v559
        %vm591 = vcmp.eq.f32.partialorder %v590, 8.507059e+37
        %v592 = vand.u32 %v559, 2147483648
        %v593 = vor.u32 1.1754944e-38, %v592
        %v594 = vsel %vm591, %v593, %v589
        %v595 = vmul.f32 1.0, %v594
        %v596 = vrcp.pop %v560
        %v597 = vmul.f32 %v560, %v596
        %v598 = vsub.f32 1.0, %v597
        %v599 = vmul.f32 %v596, %v598
        %v600 = vadd.f32 %v596, %v599
        %vm601 = vweird.f32 %v560
        %vm602 = vweird.f32 %v596
        %vm603 = vmor %vm601, %vm602
        %v604 = vsel %vm603, %v596, %v600
        %v605 = vand.u32 2147483647, %v560
        %vm606 = vcmp.eq.f32.partialorder %v605, 8.507059e+37
        %v607 = vand.u32 %v560, 2147483648
        %v608 = vor.u32 1.1754944e-38, %v607
        %v609 = vsel %vm606, %v608, %v604
        %v610 = vmul.f32 1.0, %v609
        %v611 = vrcp.pop %v561
        %v612 = vmul.f32 %v561, %v611
        %v613 = vsub.f32 1.0, %v612
        %v614 = vmul.f32 %v611, %v613
        %v615 = vadd.f32 %v611, %v614
        %vm616 = vweird.f32 %v561
        %vm617 = vweird.f32 %v611
        %vm618 = vmor %vm616, %vm617
        %v619 = vsel %vm618, %v611, %v615
        %v620 = vand.u32 2147483647, %v561
        %vm621 = vcmp.eq.f32.partialorder %v620, 8.507059e+37
        %v622 = vand.u32 %v561, 2147483648
        %v623 = vor.u32 1.1754944e-38, %v622
        %v624 = vsel %vm621, %v623, %v619
        %v625 = vmul.f32 1.0, %v624
        %v626 = vrcp.pop %v562
        %v627 = vmul.f32 %v562, %v626
        %v628 = vsub.f32 1.0, %v627
        %v629 = vmul.f32 %v626, %v628
        %v630 = vadd.f32 %v626, %v629
        %vm631 = vweird.f32 %v562
        %vm632 = vweird.f32 %v626
        %vm633 = vmor %vm631, %vm632
        %v634 = vsel %vm633, %v626, %v630
        %v635 = vand.u32 2147483647, %v562
        %vm636 = vcmp.eq.f32.partialorder %v635, 8.507059e+37
        %v637 = vand.u32 %v562, 2147483648
        %v638 = vor.u32 1.1754944e-38, %v637
        %v639 = vsel %vm636, %v638, %v634
        %v640 = vmul.f32 1.0, %v639
        %v641 = vrcp.pop %v563
        %v642 = vmul.f32 %v563, %v641
        %v643 = vsub.f32 1.0, %v642
        %v644 = vmul.f32 %v641, %v643
        %v645 = vadd.f32 %v641, %v644
        %vm646 = vweird.f32 %v563
        %vm647 = vweird.f32 %v641
        %vm648 = vmor %vm646, %vm647
        %v649 = vsel %vm648, %v641, %v645
        %v650 = vand.u32 2147483647, %v563
        %vm651 = vcmp.eq.f32.partialorder %v650, 8.507059e+37
        %v652 = vand.u32 %v563, 2147483648
        %v653 = vor.u32 1.1754944e-38, %v652
        %v654 = vsel %vm651, %v653, %v649
        %v655 = vmul.f32 1.0, %v654
        %v656 = vrcp.pop %v564
        %v657 = vmul.f32 %v564, %v656
        %v658 = vsub.f32 1.0, %v657
        %v659 = vmul.f32 %v656, %v658
        %v660 = vadd.f32 %v656, %v659
        %vm661 = vweird.f32 %v564
        %vm662 = vweird.f32 %v656
        %vm663 = vmor %vm661, %vm662
        %v664 = vsel %vm663, %v656, %v660
        %v665 = vand.u32 2147483647, %v564
        %vm666 = vcmp.eq.f32.partialorder %v665, 8.507059e+37
        %v667 = vand.u32 %v564, 2147483648
        %v668 = vor.u32 1.1754944e-38, %v667
        %v669 = vsel %vm666, %v668, %v664
        %v670 = vmul.f32 1.0, %v669
        %v671 = vrcp.pop %v565
        %v672 = vmul.f32 %v565, %v671
        %v673 = vsub.f32 1.0, %v672
        %v674 = vmul.f32 %v671, %v673
        %v675 = vadd.f32 %v671, %v674
        %vm676 = vweird.f32 %v565
        %vm677 = vweird.f32 %v671
        %vm678 = vmor %vm676, %vm677
        %v679 = vsel %vm678, %v671, %v675
        %v680 = vand.u32 2147483647, %v565
        %vm681 = vcmp.eq.f32.partialorder %v680, 8.507059e+37
        %v682 = vand.u32 %v565, 2147483648
        %v683 = vor.u32 1.1754944e-38, %v682
        %v684 = vsel %vm681, %v683, %v679
        %v685 = vmul.f32 1.0, %v684
        %vm686 = vcmask 130048
        %v688 = vsel %vm686, %v452, 0
        %v691 = vsel %vm686, %v453, 0
        %693 = vmatpush.msra.mxu0 0.0
        %694 = vmatpush.msra.mxu0 0.0
        %695 = vmatpush.msra.mxu0 0.0
        %696 = vmatpush.msra.mxu0 0.0
        %697 = vmatpush.msra.mxu0 0.0
        %698 = vmatpush.msra.mxu0 0.0
        %699 = vmatpush.msra.mxu0 0.0
        %700 = vmatpush.msra.mxu0 0.0
        %701 = vmatpush.msra.mxu0 0.0
        %702 = vmatpush.msra.mxu0 0.0
        %703 = vmatpush.msra.mxu0 0.0
        %704 = vmatpush.msra.mxu0 0.0
        %705 = vmatpush.msra.mxu0 0.0
        %706 = vmatpush.msra.mxu0 0.0
        %707 = vmatpush.msra.mxu0 %v595
        %708 = vmatpush.msra.mxu0 %v580
        %709 = vmatmul.f32.gmra.mxu0 %v688
        %v710 = vpop.f32.mrf.mxu0
        %v711 = vadd.f32 0.0, %v710
        %712 = vmatmul.f32.gmra.mxu0 %v691
        %v713 = vpop.f32.mrf.mxu0
        %v714 = vadd.f32 0.0, %v713
        %715 = vdwg.mxu0
        %v717 = vsel %vm686, %v454, 0
        %v720 = vsel %vm686, %v455, 0
        %722 = vmatpush.msra.mxu0 0.0
        %723 = vmatpush.msra.mxu0 0.0
        %724 = vmatpush.msra.mxu0 0.0
        %725 = vmatpush.msra.mxu0 0.0
        %726 = vmatpush.msra.mxu0 0.0
        %727 = vmatpush.msra.mxu0 0.0
        %728 = vmatpush.msra.mxu0 0.0
        %729 = vmatpush.msra.mxu0 0.0
        %730 = vmatpush.msra.mxu0 0.0
        %731 = vmatpush.msra.mxu0 0.0
        %732 = vmatpush.msra.mxu0 0.0
        %733 = vmatpush.msra.mxu0 0.0
        %734 = vmatpush.msra.mxu0 0.0
        %735 = vmatpush.msra.mxu0 0.0
        %736 = vmatpush.msra.mxu0 %v625
        %737 = vmatpush.msra.mxu0 %v610
        %738 = vmatmul.f32.gmra.mxu0 %v717
        %v739 = vpop.f32.mrf.mxu0
        %v740 = vadd.f32 0.0, %v739
        %741 = vmatmul.f32.gmra.mxu0 %v720
        %v742 = vpop.f32.mrf.mxu0
        %v743 = vadd.f32 0.0, %v742
        %744 = vdwg.mxu0
        %v746 = vsel %vm686, %v456, 0
        %v749 = vsel %vm686, %v457, 0
        %751 = vmatpush.msra.mxu0 0.0
        %752 = vmatpush.msra.mxu0 0.0
        %753 = vmatpush.msra.mxu0 0.0
        %754 = vmatpush.msra.mxu0 0.0
        %755 = vmatpush.msra.mxu0 0.0
        %756 = vmatpush.msra.mxu0 0.0
        %757 = vmatpush.msra.mxu0 0.0
        %758 = vmatpush.msra.mxu0 0.0
        %759 = vmatpush.msra.mxu0 0.0
        %760 = vmatpush.msra.mxu0 0.0
        %761 = vmatpush.msra.mxu0 0.0
        %762 = vmatpush.msra.mxu0 0.0
        %763 = vmatpush.msra.mxu0 0.0
        %764 = vmatpush.msra.mxu0 0.0
        %765 = vmatpush.msra.mxu0 %v655
        %766 = vmatpush.msra.mxu0 %v640
        %767 = vmatmul.f32.gmra.mxu0 %v746
        %v768 = vpop.f32.mrf.mxu0
        %v769 = vadd.f32 0.0, %v768
        %770 = vmatmul.f32.gmra.mxu0 %v749
        %v771 = vpop.f32.mrf.mxu0
        %v772 = vadd.f32 0.0, %v771
        %773 = vdwg.mxu0
        %v775 = vsel %vm686, %v458, 0
        %v778 = vsel %vm686, %v459, 0
        %780 = vmatpush.msra.mxu0 0.0
        %781 = vmatpush.msra.mxu0 0.0
        %782 = vmatpush.msra.mxu0 0.0
        %783 = vmatpush.msra.mxu0 0.0
        %784 = vmatpush.msra.mxu0 0.0
        %785 = vmatpush.msra.mxu0 0.0
        %786 = vmatpush.msra.mxu0 0.0
        %787 = vmatpush.msra.mxu0 0.0
        %788 = vmatpush.msra.mxu0 0.0
        %789 = vmatpush.msra.mxu0 0.0
        %790 = vmatpush.msra.mxu0 0.0
        %791 = vmatpush.msra.mxu0 0.0
        %792 = vmatpush.msra.mxu0 0.0
        %793 = vmatpush.msra.mxu0 0.0
        %794 = vmatpush.msra.mxu0 %v685
        %795 = vmatpush.msra.mxu0 %v670
        %796 = vmatmul.f32.gmra.mxu0 %v775
        %v797 = vpop.f32.mrf.mxu0
        %v798 = vadd.f32 0.0, %v797
        %799 = vmatmul.f32.gmra.mxu0 %v778
        %v800 = vpop.f32.mrf.mxu0
        %v801 = vadd.f32 0.0, %v800
        %802 = vdwg.mxu0
        %vm803 = vcmask 154624
        %v805 = vsel %vm803, %v439, 0
        %v808 = vsel %vm803, %v440, 0
        %v811 = vsel %vm803, %v441, 0
        %v814 = vsel %vm803, %v442, 0
        %v817 = vsel %vm803, %v443, 0
        %v820 = vsel %vm803, %v444, 0
        %v823 = vsel %vm803, %v445, 0
        %v826 = vsel %vm803, %v446, 0
        %vm828 = vcmask 1042432
        %v830 = vsel %vm828, %v466, 0
        %832 = vmatpush.msra.mxu0 0.0
        %833 = vmatpush.msra.mxu0 0.0
        %834 = vmatpush.msra.mxu0 0.0
        %835 = vmatpush.msra.mxu0 0.0
        %836 = vmatpush.msra.mxu0 0.0
        %837 = vmatpush.msra.mxu0 0.0
        %838 = vmatpush.msra.mxu0 0.0
        %839 = vmatpush.msra.mxu0 0.0
        %840 = vmatpush.msra.mxu0 0.0
        %841 = vmatpush.msra.mxu0 0.0
        %842 = vmatpush.msra.mxu0 0.0
        %843 = vmatpush.msra.mxu0 0.0
        %844 = vmatpush.msra.mxu0 0.0
        %845 = vmatpush.msra.mxu0 %v830
        %846 = vmatpush.msra.mxu0 %v465
        %847 = vmatpush.msra.mxu0 %v464
        %848 = vmatmul.f32.gmra.mxu0 %v805
        %v849 = vpop.f32.mrf.mxu0
        %v850 = vadd.f32 0.0, %v849
        %851 = vmatmul.f32.gmra.mxu0 %v808
        %v852 = vpop.f32.mrf.mxu0
        %v853 = vadd.f32 0.0, %v852
        %854 = vmatmul.f32.gmra.mxu0 %v811
        %v855 = vpop.f32.mrf.mxu0
        %v856 = vadd.f32 0.0, %v855
        %857 = vmatmul.f32.gmra.mxu0 %v814
        %v858 = vpop.f32.mrf.mxu0
        %v859 = vadd.f32 0.0, %v858
        %860 = vmatmul.f32.gmra.mxu0 %v817
        %v861 = vpop.f32.mrf.mxu0
        %v862 = vadd.f32 0.0, %v861
        %863 = vmatmul.f32.gmra.mxu0 %v820
        %v864 = vpop.f32.mrf.mxu0
        %v865 = vadd.f32 0.0, %v864
        %866 = vmatmul.f32.gmra.mxu0 %v823
        %v867 = vpop.f32.mrf.mxu0
        %v868 = vadd.f32 0.0, %v867
        %869 = vmatmul.f32.gmra.mxu0 %v826
        %v870 = vpop.f32.mrf.mxu0
        %v871 = vadd.f32 0.0, %v870
        %872 = vdwg.mxu0
        %881 = vrot.lane.b32.xlu0 %v850, 32
        %v882 = vpop.permute.xlu0 %881
        %883 = vrot.lane.b32.xlu0 %v853, 32
        %v884 = vpop.permute.xlu0 %883
        %885 = vrot.lane.b32.xlu0 %v856, 32
        %v886 = vpop.permute.xlu0 %885
        %887 = vrot.lane.b32.xlu0 %v859, 32
        %v888 = vpop.permute.xlu0 %887
        %889 = vrot.lane.b32.xlu0 %v862, 32
        %v890 = vpop.permute.xlu0 %889
        %891 = vrot.lane.b32.xlu0 %v865, 32
        %v892 = vpop.permute.xlu0 %891
        %893 = vrot.lane.b32.xlu0 %v868, 32
        %v894 = vpop.permute.xlu0 %893
        %895 = vrot.lane.b32.xlu0 %v871, 32
        %v896 = vpop.permute.xlu0 %895
        %v905 = vsel %vm468, %v431, %v882
        %v906 = vsel %vm468, %v432, %v884
        %v907 = vsel %vm468, %v433, %v886
        %v908 = vsel %vm468, %v434, %v888
        %v909 = vsel %vm468, %v435, %v890
        %v910 = vsel %vm468, %v436, %v892
        %v911 = vsel %vm468, %v437, %v894
        %v912 = vsel %vm468, %v438, %v896
        %914 = vset.pattern.permute.xlu0 0
        %915 = vperm.xlu0 %914, %v711
        %v916 = vpop.permute.xlu0 %915
        %919 = vset.pattern.permute.xlu0 0
        %920 = vperm.xlu0 %919, %v714
        %v921 = vpop.permute.xlu0 %920
        %924 = vset.pattern.permute.xlu0 0
        %925 = vperm.xlu0 %924, %v740
        %v926 = vpop.permute.xlu0 %925
        %929 = vset.pattern.permute.xlu0 0
        %930 = vperm.xlu0 %929, %v743
        %v931 = vpop.permute.xlu0 %930
        %934 = vset.pattern.permute.xlu0 0
        %935 = vperm.xlu0 %934, %v769
        %v936 = vpop.permute.xlu0 %935
        %939 = vset.pattern.permute.xlu0 0
        %940 = vperm.xlu0 %939, %v772
        %v941 = vpop.permute.xlu0 %940
        %944 = vset.pattern.permute.xlu0 0
        %945 = vperm.xlu0 %944, %v798
        %v946 = vpop.permute.xlu0 %945
        %949 = vset.pattern.permute.xlu0 0
        %950 = vperm.xlu0 %949, %v801
        %v951 = vpop.permute.xlu0 %950
        %v953 = vmul.f32 %v916, %v905
        %v954 = vmul.f32 %v921, %v906
        %v955 = vmul.f32 %v926, %v907
        %v956 = vmul.f32 %v931, %v908
        %v957 = vmul.f32 %v936, %v909
        %v958 = vmul.f32 %v941, %v910
        %v959 = vmul.f32 %v946, %v911
        %v960 = vmul.f32 %v951, %v912
        %v962 = vsel %vm686, %v460, 0
        %964 = vmatpush.msra.mxu0 0.0
        %965 = vmatpush.msra.mxu0 0.0
        %966 = vmatpush.msra.mxu0 0.0
        %967 = vmatpush.msra.mxu0 0.0
        %968 = vmatpush.msra.mxu0 0.0
        %969 = vmatpush.msra.mxu0 0.0
        %970 = vmatpush.msra.mxu0 0.0
        %971 = vmatpush.msra.mxu0 0.0
        %972 = vmatpush.msra.mxu0 0.0
        %973 = vmatpush.msra.mxu0 0.0
        %974 = vmatpush.msra.mxu0 0.0
        %975 = vmatpush.msra.mxu0 0.0
        %976 = vmatpush.msra.mxu0 0.0
        %977 = vmatpush.msra.mxu0 0.0
        %978 = vmatpush.msra.mxu0 %v954
        %979 = vmatpush.msra.mxu0 %v953
        %980 = vmatmul.f32.gmra.mxu0 %v962
        %v981 = vpop.f32.mrf.mxu0
        %v982 = vadd.f32 0.0, %v981
        %983 = vdwg.mxu0
        %v985 = vsel %vm686, %v461, 0
        %987 = vmatpush.msra.mxu0 0.0
        %988 = vmatpush.msra.mxu0 0.0
        %989 = vmatpush.msra.mxu0 0.0
        %990 = vmatpush.msra.mxu0 0.0
        %991 = vmatpush.msra.mxu0 0.0
        %992 = vmatpush.msra.mxu0 0.0
        %993 = vmatpush.msra.mxu0 0.0
        %994 = vmatpush.msra.mxu0 0.0
        %995 = vmatpush.msra.mxu0 0.0
        %996 = vmatpush.msra.mxu0 0.0
        %997 = vmatpush.msra.mxu0 0.0
        %998 = vmatpush.msra.mxu0 0.0
        %999 = vmatpush.msra.mxu0 0.0
        %1000 = vmatpush.msra.mxu0 0.0
        %1001 = vmatpush.msra.mxu0 %v956
        %1002 = vmatpush.msra.mxu0 %v955
        %1003 = vmatmul.f32.gmra.mxu0 %v985
        %v1004 = vpop.f32.mrf.mxu0
        %v1005 = vadd.f32 0.0, %v1004
        %1006 = vdwg.mxu0
        %v1008 = vsel %vm686, %v462, 0
        %1010 = vmatpush.msra.mxu0 0.0
        %1011 = vmatpush.msra.mxu0 0.0
        %1012 = vmatpush.msra.mxu0 0.0
        %1013 = vmatpush.msra.mxu0 0.0
        %1014 = vmatpush.msra.mxu0 0.0
        %1015 = vmatpush.msra.mxu0 0.0
        %1016 = vmatpush.msra.mxu0 0.0
        %1017 = vmatpush.msra.mxu0 0.0
        %1018 = vmatpush.msra.mxu0 0.0
        %1019 = vmatpush.msra.mxu0 0.0
        %1020 = vmatpush.msra.mxu0 0.0
        %1021 = vmatpush.msra.mxu0 0.0
        %1022 = vmatpush.msra.mxu0 0.0
        %1023 = vmatpush.msra.mxu0 0.0
        %1024 = vmatpush.msra.mxu0 %v958
        %1025 = vmatpush.msra.mxu0 %v957
        %1026 = vmatmul.f32.gmra.mxu0 %v1008
        %v1027 = vpop.f32.mrf.mxu0
        %v1028 = vadd.f32 0.0, %v1027
        %1029 = vdwg.mxu0
        %v1031 = vsel %vm686, %v463, 0
        %1033 = vmatpush.msra.mxu0 0.0
        %1034 = vmatpush.msra.mxu0 0.0
        %1035 = vmatpush.msra.mxu0 0.0
        %1036 = vmatpush.msra.mxu0 0.0
        %1037 = vmatpush.msra.mxu0 0.0
        %1038 = vmatpush.msra.mxu0 0.0
        %1039 = vmatpush.msra.mxu0 0.0
        %1040 = vmatpush.msra.mxu0 0.0
        %1041 = vmatpush.msra.mxu0 0.0
        %1042 = vmatpush.msra.mxu0 0.0
        %1043 = vmatpush.msra.mxu0 0.0
        %1044 = vmatpush.msra.mxu0 0.0
        %1045 = vmatpush.msra.mxu0 0.0
        %1046 = vmatpush.msra.mxu0 0.0
        %1047 = vmatpush.msra.mxu0 %v960
        %1048 = vmatpush.msra.mxu0 %v959
        %1049 = vmatmul.f32.gmra.mxu0 %v1031
        %v1050 = vpop.f32.mrf.mxu0
        %v1051 = vadd.f32 0.0, %v1050
        %1052 = vdwg.mxu0
        %vm1053 = vcmask 314368
        %1054 = vst.msk [vmem:[%s427] sm:$0xf] %vm1053, %v982
        %1055 = vst.msk [vmem:[%s427 + $0x4] sm:$0xf] %vm1053, %v1005
        %1056 = vst.msk [vmem:[%s427 + $0x8] sm:$0xf] %vm1053, %v1028
        %1057 = vst.msk [vmem:[%s427 + $0xc] sm:$0xf] %vm1053, %v1051
        %s1058 = sand.u32 %s187, 1
        %s1059 = scalar_lea.sflag [#allocation6], %s1058
        %s1060 = sand.u32 %s187, 1
        %s1061 = smul.addr %s1060, 16
        %s1062 = scalar_lea.vmem [#allocation5], %s1061
        // Predicated region
        $region125: #{tpu_custom_call.1} parent=115 // pred_check
          %p1063 = pneg %p197
        $region126: #{tpu_custom_call.1} parent=115 // pred_check_branch
          %1065 = sbr.rel (%p1063) target = $region128
        $region127: #{tpu_custom_call.1} parent=115 // pred_region
          %s1066 = smul.u32 4, %s22
          %1068 = vsyncadd %s1059, 0
          %s1069 = smul.addr %s1066, 4
          %s1070 = scalar_lea.hbm %s7, %s1069
          %s1071 = sshll.u32 %s1062, 4
          %s1072 = int_to_ptr.vmem [resolvable:$true] %s1071
          %s1073 = sshll.u32 %s1070, 4
          %s1074 = int_to_ptr.hbm [resolvable:$true] %s1073
          %1079 = dma.vmem_to_hbm [thread:$0]  %s1072, 256, %s1074, %s1059, 64, 64, 4
        $region128: #{tpu_custom_call.1} parent=115 // pred_fallthru
          _
      $region116: #{tpu_custom_call.1} parent=5 // pred_fallthru
        _
      %p1080 = scmp.le.s32.totalorder 2, %s17
      // Predicated region
      $region129: #{tpu_custom_call.1} parent=5 // pred_check
        %p1081 = pneg %p1080
      $region130: #{tpu_custom_call.1} parent=5 // pred_check_branch
        %1083 = sbr.rel (%p1081) target = $region132
      $region131: #{tpu_custom_call.1} parent=5 // pred_region
        %s1084 = ssub.s32 %s17, 2
        // Predicated region
        $region133: #{tpu_custom_call.1} parent=131 // pred_check
          %p1085 = pneg %p203
        $region134: #{tpu_custom_call.1} parent=131 // pred_check_branch
          %1087 = sbr.rel (%p1085) target = $region136
        $region135: #{tpu_custom_call.1} parent=131 // pred_region
          %s1088 = sand.u32 %s188, 1
          %s1089 = scalar_lea.sflag [#allocation6], %s1088
          %s1090 = sand.u32 %s188, 1
          %s1091 = smul.addr %s1090, 16
          %s1092 = scalar_lea.vmem [#allocation5], %s1091
          %1094 = dma.done %s1089, 256
        $region136: #{tpu_custom_call.1} parent=131 // pred_fallthru
          _
      $region132: #{tpu_custom_call.1} parent=5 // pred_fallthru
        _
    $region6: #{tpu_custom_call.1} parent=1 // loop_footer
      %s21 = sadd.s32 1, %s17
    $region7: #{tpu_custom_call.1} parent=1 // loop_footer_branch
      %16 = sbr.rel target = $region3
    $region8: #{tpu_custom_call.1} parent=1 // loop_exit
      _
    %1095 = vsyncpa [#allocation6], 1
    %s1096 = scalar_lea.sflag [#allocation6], 1
    %1097 = vsyncpa %s1096, 1

</llo_original>
